<compile_context>
chip_gen: v6e
topology: v6e:2x2x1
jax: 0.10.0
libtpu: 0.0.40
codegen_flags: <defaults>
</compile_context>

<pallas_src>
import functools

import jax
import jax.numpy as jnp
from jax.experimental import pallas as pl
from jax.experimental.pallas import tpu as pltpu

LANE = 128        # lane width (last-dim granularity)
SUBLANE_BF16 = 16 # bf16 sublane packing (second-to-last dim granularity)


def _round_up(x, m):
    return ((x + m - 1) // m) * m


def _vmem_capacity_bytes():
    """Per-core VMEM capacity; conservative default if the query fails."""
    try:
        return int(pltpu.get_tpu_info().vmem_capacity_bytes)
    except Exception:
        return 64 * 1024 * 1024  # v7x per-TC size = safe lower bound


def _pick_tm(batch, dims_p):
    """Batch-tile rows: MXU-filling when possible, VMEM-safe always."""
    max_dim_p = max(dims_p)
    if batch >= 512:
        # 256 fills the 2x256x256 MXU on v6e/v7x and still leaves >=2 grid
        # steps so the "parallel" axis can shard across both v7x TCs.
        tm = 256
    elif batch >= 128:
        tm = 128
    else:
        tm = _round_up(batch, SUBLANE_BF16)
    # Cap tm so ~3 live f32 intermediates of the widest layer stay within a
    # few MiB of compiler-managed VMEM (avoid turning MXU-bound into
    # spill-bound).
    while tm > SUBLANE_BF16 and 3 * tm * max_dim_p * 4 > (6 << 20):
        tm //= 2
    return max(tm, SUBLANE_BF16)


def _mlp_fused_kernel(*refs, n_layers: int):
    """refs = (x_ref, w0, b0, w1, b1, ..., w_{L-1}, b_{L-1}, o_ref).

    Whole MLP for one batch tile. Matmuls run with bf16 operands and f32
    accumulation; bias-add / ReLU stay in f32. Intermediates never touch HBM.
    """
    x_ref = refs[0]
    o_ref = refs[-1]
    h = x_ref[...]                                   # bf16 batch tile
    acc = None
    for i in range(n_layers):
        w_ref = refs[1 + 2 * i]
        b_ref = refs[2 + 2 * i]
        acc = jnp.dot(h, w_ref[...], preferred_element_type=jnp.float32)
        acc = acc + b_ref[...]                       # (1, N) f32 bias broadcast
        if i < n_layers - 1:
            acc = jnp.maximum(acc, 0.0)              # ReLU on hidden layers
            h = acc.astype(jnp.bfloat16)             # bf16 operand for next MXU pass
    o_ref[...] = acc.astype(o_ref.dtype)             # final store from f32 accumulator


def prepare_params(params, input_dims):
    """Pad + cast parameters ONCE (outside the per-step forward path).

    Weights -> lane/sublane-dense bf16 (MXU-native operands), biases -> f32
    rows of shape (1, padded_out).
    """
    dims = [input_dims] + [w.shape[1] for (w, _) in params]
    dims_p = [_round_up(d, LANE) for d in dims]
    padded = []
    for i, (w, b) in enumerate(params):
        wp = jnp.pad(
            w.astype(jnp.float32),
            ((0, dims_p[i] - w.shape[0]), (0, dims_p[i + 1] - w.shape[1])),
        ).astype(jnp.bfloat16)
        bp = jnp.pad(b.astype(jnp.float32), (0, dims_p[i + 1] - b.shape[0]))
        padded.append((wp, bp.reshape(1, -1)))
    return {
        "weights": padded,
        "dims": dims,
        "dims_p": dims_p,
        "out_dim": params[-1][0].shape[1],
        "n_layers": len(params),
    }


def mlp_forward(x, prepped):
    """x: (B, C, H, W) or (B, D). Returns (B, n_class) f32 logits."""
    B = x.shape[0]
    x2 = x.reshape(B, -1).astype(jnp.float32)
    din = x2.shape[1]
    dims = prepped["dims"]
    dims_p = prepped["dims_p"]
    n_layers = prepped["n_layers"]
    out_dim = prepped["out_dim"]
    assert din == dims[0], (din, dims[0])

    # Batch tile (sublane-dense for bf16) and padded batch.
    tm = _pick_tm(B, dims_p)
    bp_rows = _round_up(B, tm)

    # Zero-pad the input and cast to bf16 (MXU operand dtype).
    xp = jnp.pad(x2, ((0, bp_rows - B), (0, dims_p[0] - din))).astype(jnp.bfloat16)

    flat_wb = []
    param_bytes = 0
    for wpad, bpad in prepped["weights"]:
        flat_wb.append(wpad)
        flat_wb.append(bpad)
        param_bytes += (wpad.size * wpad.dtype.itemsize
                        + bpad.size * bpad.dtype.itemsize)

    # Generation-aware VMEM accounting (replaces the old fixed 12 MiB assert).
    vmem_cap = _vmem_capacity_bytes()
    act_bytes = (2 * tm * dims_p[0] * 2          # double-buffered bf16 x tiles
                 + 2 * tm * dims_p[-1] * 4       # double-buffered f32 out tiles
                 + 3 * tm * max(dims_p) * 4)     # live f32 intermediates
    budget = int(vmem_cap * 0.75)                # ~48 MiB v7x, ~96 MiB v5e/v6e
    assert param_bytes + act_bytes <= budget, (
        "MLP weights too large for the fused whole-weights-in-VMEM kernel "
        f"({param_bytes + act_bytes} > {budget} bytes); an inner "
        "pltpu.emit_pipeline over K would be required for the oversized layer.")
    # Raise the scoped VMEM limit explicitly (v5e defaults to 16 MiB) while
    # staying under the physical per-core capacity (v7x: 64 MiB).
    vmem_limit = min(int(vmem_cap * 0.9),
                     max(48 << 20, 2 * param_bytes + act_bytes + (8 << 20)))

    def _const0(i):
        return (0, 0)

    def _run(single_buffer_weights):
        # x / out tile the batch axis; weights & biases are grid-invariant
        # blocks (same block index every step -> stay resident in VMEM).
        in_specs = [pl.BlockSpec((tm, dims_p[0]), lambda i: (i, 0))]
        for li in range(n_layers):
            kin, kout = dims_p[li], dims_p[li + 1]
            if single_buffer_weights:
                # Grid-invariant blocks don't need double buffering; halving
                # their footprint is the biggest VMEM lever.
                in_specs.append(pl.BlockSpec((kin, kout), _const0,
                                             pipeline_mode=pl.Buffered(1)))
                in_specs.append(pl.BlockSpec((1, kout), _const0,
                                             pipeline_mode=pl.Buffered(1)))
            else:
                in_specs.append(pl.BlockSpec((kin, kout), _const0))
                in_specs.append(pl.BlockSpec((1, kout), _const0))
        out_spec = pl.BlockSpec((tm, dims_p[-1]), lambda i: (i, 0))

        kernel = functools.partial(_mlp_fused_kernel, n_layers=n_layers)
        fn = pl.pallas_call(
            kernel,
            out_shape=jax.ShapeDtypeStruct((bp_rows, dims_p[-1]), jnp.float32),
            grid_spec=pltpu.PrefetchScalarGridSpec(
                num_scalar_prefetch=0,
                grid=(bp_rows // tm,),
                in_specs=in_specs,
                out_specs=out_spec,
            ),
            compiler_params=pltpu.CompilerParams(
                # Batch tiles are independent -> shard across TCs on v7x.
                dimension_semantics=("parallel",),
                vmem_limit_bytes=vmem_limit,
            ),
        )
        return jax.block_until_ready(fn(xp, *flat_wb))

    try:
        out_padded = _run(True)
    except Exception:
        # pipeline_mode=pl.Buffered(1) not supported by this jax version /
        # lowering; fall back to default (double-buffered) weight blocks.
        out_padded = _run(False)

    # Strip batch + lane padding.
    return out_padded[:B, :out_dim]


def init_mlp_params(key, input_dims, n_hiddens, n_class, dtype=jnp.float32):
    """Deterministic init mimicking nn.Linear's uniform(-1/sqrt(fan_in), ...)."""
    if isinstance(n_hiddens, int):
        n_hiddens = [n_hiddens]
    else:
        n_hiddens = list(n_hiddens)

    dims = [input_dims] + n_hiddens + [n_class]
    params = []
    for i in range(len(dims) - 1):
        fan_in, fan_out = dims[i], dims[i + 1]
        key, kw, kb = jax.random.split(key, 3)
        bound = 1.0 / jnp.sqrt(float(fan_in))
        w = jax.random.uniform(kw, (fan_in, fan_out), dtype, -bound, bound)
        b = jax.random.uniform(kb, (fan_out,), dtype, -bound, bound)
        params.append((w, b))
    return params


if __name__ == "__main__":
    key = jax.random.PRNGKey(0)
    kx, kp = jax.random.split(key)

    # Small shapes consistent with the module: 16x16 single-channel images,
    # one hidden layer of 32, 10 classes (Kuzushiji-MNIST-like).
    B, C, H, W = 2, 1, 16, 16
    input_dims = C * H * W
    n_hiddens = [32]
    n_class = 10

    x = jax.random.normal(kx, (B, C, H, W), jnp.float32)
    params = init_mlp_params(kp, input_dims, n_hiddens, n_class)

    # Pad/cast weights once, outside the forward path.
    prepped = prepare_params(params, input_dims)

    out = mlp_forward(x, prepped)
    out = jax.block_until_ready(out)

    # Cross-check against a plain-JAX f32 reference of the module's math
    # (tolerance loosened for bf16 matmul operands; accumulation is f32).
    ref = x.reshape(B, -1)
    for i, (w, b) in enumerate(params):
        ref = ref @ w + b
        if i < len(params) - 1:
            ref = jnp.maximum(ref, 0.0)
    assert out.shape == (B, n_class), out.shape
    assert jnp.allclose(out, ref, atol=5e-2, rtol=5e-2), (
        float(jnp.max(jnp.abs(out - ref))))

    print("KERNEL_OK")
</pallas_src>

<mosaic_0001>
module attributes {stable_mosaic.version = 11 : i64} {
  func.func @_mlp_fused_kernel(%arg0: i32, %arg1: memref<16x256xbf16, #tpu.memory_space<vmem>>, %arg2: memref<256x128xbf16, #tpu.memory_space<vmem>>, %arg3: memref<1x128xf32, #tpu.memory_space<vmem>>, %arg4: memref<128x128xbf16, #tpu.memory_space<vmem>>, %arg5: memref<1x128xf32, #tpu.memory_space<vmem>>, %arg6: memref<16x128xf32, #tpu.memory_space<vmem>>) attributes {dimension_semantics = [#tpu.dimension_semantics<parallel>], iteration_bounds = array<i64: 1>, scalar_prefetch = 0 : i64, scratch_operands = 0 : i64, tpu.core_type = #tpu.core_type<tc>, window_params = [{transform_indices = @transform_0, window_bounds = array<i64: 16, 256>}, {pipeline_mode = #tpu.pipeline_mode<synchronous>, transform_indices = @transform_1, window_bounds = array<i64: 256, 128>}, {pipeline_mode = #tpu.pipeline_mode<synchronous>, transform_indices = @transform_2, window_bounds = array<i64: 1, 128>}, {pipeline_mode = #tpu.pipeline_mode<synchronous>, transform_indices = @transform_3, window_bounds = array<i64: 128, 128>}, {pipeline_mode = #tpu.pipeline_mode<synchronous>, transform_indices = @transform_4, window_bounds = array<i64: 1, 128>}, {transform_indices = @transform_5, window_bounds = array<i64: 16, 128>}]} {
    %c0 = arith.constant 0 : index
    %c0_0 = arith.constant 0 : index
    %0 = vector.load %arg1[%c0, %c0_0] : memref<16x256xbf16, #tpu.memory_space<vmem>>, vector<16x256xbf16>
    %c0_1 = arith.constant 0 : index
    %c0_2 = arith.constant 0 : index
    %1 = vector.load %arg2[%c0_1, %c0_2] : memref<256x128xbf16, #tpu.memory_space<vmem>>, vector<256x128xbf16>
    %cst = arith.constant dense<0.000000e+00> : vector<16x128xf32>
    %2 = tpu.matmul %0, %1, %cst {dimension_numbers = #tpu.dot_dimension_numbers<[1], [0], [0], [1], [0, 0, 1, 1], [], []>} : vector<16x256xbf16>, vector<256x128xbf16>, vector<16x128xf32> -> vector<16x128xf32>
    %c0_3 = arith.constant 0 : index
    %c0_4 = arith.constant 0 : index
    %3 = vector.load %arg3[%c0_3, %c0_4] : memref<1x128xf32, #tpu.memory_space<vmem>>, vector<1x128xf32>
    %4 = vector.broadcast %3 : vector<1x128xf32> to vector<16x128xf32>
    %5 = arith.addf %2, %4 : vector<16x128xf32>
    %cst_5 = arith.constant 0.000000e+00 : f32
    %6 = vector.broadcast %cst_5 : f32 to vector<16x128xf32>
    %7 = arith.maximumf %5, %6 : vector<16x128xf32>
    %8 = arith.truncf %7 : vector<16x128xf32> to vector<16x128xbf16>
    %c0_6 = arith.constant 0 : index
    %c0_7 = arith.constant 0 : index
    %9 = vector.load %arg4[%c0_6, %c0_7] : memref<128x128xbf16, #tpu.memory_space<vmem>>, vector<128x128xbf16>
    %cst_8 = arith.constant dense<0.000000e+00> : vector<16x128xf32>
    %10 = tpu.matmul %8, %9, %cst_8 {dimension_numbers = #tpu.dot_dimension_numbers<[1], [0], [0], [1], [0, 0, 1, 1], [], []>} : vector<16x128xbf16>, vector<128x128xbf16>, vector<16x128xf32> -> vector<16x128xf32>
    %c0_9 = arith.constant 0 : index
    %c0_10 = arith.constant 0 : index
    %11 = vector.load %arg5[%c0_9, %c0_10] : memref<1x128xf32, #tpu.memory_space<vmem>>, vector<1x128xf32>
    %12 = vector.broadcast %11 : vector<1x128xf32> to vector<16x128xf32>
    %13 = arith.addf %10, %12 : vector<16x128xf32>
    %c0_11 = arith.constant 0 : index
    %c0_12 = arith.constant 0 : index
    %14 = vector.load %arg6[%c0_11, %c0_12] : memref<16x128xf32, #tpu.memory_space<vmem>>, vector<16x128xf32>
    tpu.vector_store %arg6[%c0_11, %c0_12], %13 {strides = array<i32>} : memref<16x128xf32, #tpu.memory_space<vmem>>, vector<16x128xf32>,
    return
  }
  func.func @transform_0(%arg0: i32) -> (i32, i32) {
    %c0_i32 = arith.constant 0 : i32
    %c0_i32_0 = arith.constant 0 : i32
    return %arg0, %c0_i32 : i32, i32
  }
  func.func @transform_1(%arg0: i32) -> (i32, i32) {
    %c0_i32 = arith.constant 0 : i32
    %c0_i32_0 = arith.constant 0 : i32
    %c0_i32_1 = arith.constant 0 : i32
    return %c0_i32, %c0_i32_0 : i32, i32
  }
  func.func @transform_2(%arg0: i32) -> (i32, i32) {
    %c0_i32 = arith.constant 0 : i32
    %c0_i32_0 = arith.constant 0 : i32
    %c0_i32_1 = arith.constant 0 : i32
    return %c0_i32, %c0_i32_0 : i32, i32
  }
  func.func @transform_3(%arg0: i32) -> (i32, i32) {
    %c0_i32 = arith.constant 0 : i32
    %c0_i32_0 = arith.constant 0 : i32
    %c0_i32_1 = arith.constant 0 : i32
    return %c0_i32, %c0_i32_0 : i32, i32
  }
  func.func @transform_4(%arg0: i32) -> (i32, i32) {
    %c0_i32 = arith.constant 0 : i32
    %c0_i32_0 = arith.constant 0 : i32
    %c0_i32_1 = arith.constant 0 : i32
    return %c0_i32, %c0_i32_0 : i32, i32
  }
  func.func @transform_5(%arg0: i32) -> (i32, i32) {
    %c0_i32 = arith.constant 0 : i32
    %c0_i32_0 = arith.constant 0 : i32
    return %arg0, %c0_i32 : i32, i32
  }
}

module attributes {stable_mosaic.version = 11 : i64} {
  func.func @_mlp_fused_kernel(%arg0: i32, %arg1: memref<16x256xbf16, #tpu.memory_space<vmem>>, %arg2: memref<256x128xbf16, #tpu.memory_space<vmem>>, %arg3: memref<1x128xf32, #tpu.memory_space<vmem>>, %arg4: memref<128x128xbf16, #tpu.memory_space<vmem>>, %arg5: memref<1x128xf32, #tpu.memory_space<vmem>>, %arg6: memref<16x128xf32, #tpu.memory_space<vmem>>) attributes {dimension_semantics = [#tpu.dimension_semantics<parallel>], iteration_bounds = array<i64: 1>, scalar_prefetch = 0 : i64, scratch_operands = 0 : i64, tpu.core_type = #tpu.core_type<tc>, window_params = [{transform_indices = @transform_0, window_bounds = array<i64: 16, 256>}, {pipeline_mode = #tpu.pipeline_mode<synchronous>, transform_indices = @transform_1, window_bounds = array<i64: 256, 128>}, {pipeline_mode = #tpu.pipeline_mode<synchronous>, transform_indices = @transform_2, window_bounds = array<i64: 1, 128>}, {pipeline_mode = #tpu.pipeline_mode<synchronous>, transform_indices = @transform_3, window_bounds = array<i64: 128, 128>}, {pipeline_mode = #tpu.pipeline_mode<synchronous>, transform_indices = @transform_4, window_bounds = array<i64: 1, 128>}, {transform_indices = @transform_5, window_bounds = array<i64: 16, 128>}]} {
    %c0 = arith.constant 0 : index
    %c0_0 = arith.constant 0 : index
    %0 = vector.load %arg1[%c0, %c0_0] : memref<16x256xbf16, #tpu.memory_space<vmem>>, vector<16x256xbf16>
    %c0_1 = arith.constant 0 : index
    %c0_2 = arith.constant 0 : index
    %1 = vector.load %arg2[%c0_1, %c0_2] : memref<256x128xbf16, #tpu.memory_space<vmem>>, vector<256x128xbf16>
    %cst = arith.constant dense<0.000000e+00> : vector<16x128xf32>
    %2 = tpu.matmul %0, %1, %cst {dimension_numbers = #tpu.dot_dimension_numbers<[1], [0], [0], [1], [0, 0, 1, 1], [], []>} : vector<16x256xbf16>, vector<256x128xbf16>, vector<16x128xf32> -> vector<16x128xf32>
    %c0_3 = arith.constant 0 : index
    %c0_4 = arith.constant 0 : index
    %3 = vector.load %arg3[%c0_3, %c0_4] : memref<1x128xf32, #tpu.memory_space<vmem>>, vector<1x128xf32>
    %4 = vector.broadcast %3 : vector<1x128xf32> to vector<16x128xf32>
    %5 = arith.addf %2, %4 : vector<16x128xf32>
    %cst_5 = arith.constant 0.000000e+00 : f32
    %6 = vector.broadcast %cst_5 : f32 to vector<16x128xf32>
    %7 = arith.maximumf %5, %6 : vector<16x128xf32>
    %8 = arith.truncf %7 : vector<16x128xf32> to vector<16x128xbf16>
    %c0_6 = arith.constant 0 : index
    %c0_7 = arith.constant 0 : index
    %9 = vector.load %arg4[%c0_6, %c0_7] : memref<128x128xbf16, #tpu.memory_space<vmem>>, vector<128x128xbf16>
    %cst_8 = arith.constant dense<0.000000e+00> : vector<16x128xf32>
    %10 = tpu.matmul %8, %9, %cst_8 {dimension_numbers = #tpu.dot_dimension_numbers<[1], [0], [0], [1], [0, 0, 1, 1], [], []>} : vector<16x128xbf16>, vector<128x128xbf16>, vector<16x128xf32> -> vector<16x128xf32>
    %c0_9 = arith.constant 0 : index
    %c0_10 = arith.constant 0 : index
    %11 = vector.load %arg5[%c0_9, %c0_10] : memref<1x128xf32, #tpu.memory_space<vmem>>, vector<1x128xf32>
    %12 = vector.broadcast %11 : vector<1x128xf32> to vector<16x128xf32>
    %13 = arith.addf %10, %12 : vector<16x128xf32>
    %c0_11 = arith.constant 0 : index
    %c0_12 = arith.constant 0 : index
    %14 = vector.load %arg6[%c0_11, %c0_12] : memref<16x128xf32, #tpu.memory_space<vmem>>, vector<16x128xf32>
    tpu.vector_store %arg6[%c0_11, %c0_12], %13 {strides = array<i32>} : memref<16x128xf32, #tpu.memory_space<vmem>>, vector<16x128xf32>,
    return
  }
  func.func @transform_0(%arg0: i32) -> (i32, i32) {
    %c0_i32 = arith.constant 0 : i32
    %c0_i32_0 = arith.constant 0 : i32
    return %arg0, %c0_i32 : i32, i32
  }
  func.func @transform_1(%arg0: i32) -> (i32, i32) {
    %c0_i32 = arith.constant 0 : i32
    %c0_i32_0 = arith.constant 0 : i32
    %c0_i32_1 = arith.constant 0 : i32
    return %c0_i32, %c0_i32_0 : i32, i32
  }
  func.func @transform_2(%arg0: i32) -> (i32, i32) {
    %c0_i32 = arith.constant 0 : i32
    %c0_i32_0 = arith.constant 0 : i32
    %c0_i32_1 = arith.constant 0 : i32
    return %c0_i32, %c0_i32_0 : i32, i32
  }
  func.func @transform_3(%arg0: i32) -> (i32, i32) {
    %c0_i32 = arith.constant 0 : i32
    %c0_i32_0 = arith.constant 0 : i32
    %c0_i32_1 = arith.constant 0 : i32
    return %c0_i32, %c0_i32_0 : i32, i32
  }
  func.func @transform_4(%arg0: i32) -> (i32, i32) {
    %c0_i32 = arith.constant 0 : i32
    %c0_i32_0 = arith.constant 0 : i32
    %c0_i32_1 = arith.constant 0 : i32
    return %c0_i32, %c0_i32_0 : i32, i32
  }
  func.func @transform_5(%arg0: i32) -> (i32, i32) {
    %c0_i32 = arith.constant 0 : i32
    %c0_i32_0 = arith.constant 0 : i32
    return %arg0, %c0_i32 : i32, i32
  }
}

</mosaic_0001>

<llo_original>
// kernel: tpu_custom_call.1
$region0: #{tpu_custom_call.1}
  #allocation0 [shape = 'u32[]', space=smem, size = 0x4, offset = 0x4, fixed_abs, tag = 'smem constant byte address 0x4 - core index']
  #allocation1 [shape = 'u32[144,128]{1,0:T(1,128)}', space=vmem, size = 0x12000, scoped, tag = 'internal scratch']
  %s0 = inlined_call_operand.hbm [shape: bf16[16,256], index: 0, kind: input, shape index: {}]
  %s1 = inlined_call_operand.hbm [shape: bf16[256,128], index: 1, kind: input, shape index: {}]
  %s2 = inlined_call_operand.vmem [shape: f32[1,128], index: 2, kind: input, shape index: {}]
  %s3 = inlined_call_operand.hbm [shape: bf16[128,128], index: 3, kind: input, shape index: {}]
  %s4 = inlined_call_operand.vmem [shape: f32[1,128], index: 4, kind: input, shape index: {}]
  %s5 = inlined_call_operand.hbm [shape: f32[16,128], index: 5, kind: output, shape index: {}]
  %s6 = sld [smem:[#allocation0]]
  $region42: #{tpu_custom_call.1} parent=0
    _
  %s8 = ssub.s32 1, %s6
  %s9 = scalar_select 0, %s8, %s6
  $region1: #{tpu_custom_call.1} parent=0
    #allocation2 [shape = 'u8[8192]{0}', space=vmem, size = 0x2000, scoped, tag = 'input window, operand 0, single buffered']
    #allocation3 [shape = 's32[1]{0}', space=sflag, size = 0x4, scoped, tag = 'scoped memory for tpu_custom_call.1']
    #allocation4 [shape = 's32[1]{0}', space=sflag, size = 0x4, scoped, tag = 'scoped memory for tpu_custom_call.1']
    #allocation5 [shape = 'u8[65536]{0}', space=vmem, size = 0x10000, scoped, tag = 'input window, operand 1, single buffered']
    #allocation6 [shape = 's32[1]{0}', space=sflag, size = 0x4, scoped, tag = 'scoped memory for tpu_custom_call.1']
    #allocation7 [shape = 'u8[32768]{0}', space=vmem, size = 0x8000, scoped, tag = 'input window, operand 3, single buffered']
    #allocation8 [shape = 'u8[8192]{0}', space=vmem, size = 0x2000, scoped, tag = 'output window, operand 0, single buffered']
    %10 = vsyncpa [#allocation3], 0
    %11 = vsyncpa [#allocation6], 0
    %12 = vsyncpa [#allocation4], 0
    // Predicated region
    $region2: #{tpu_custom_call.1} parent=1 // pred_check
      _
    $region3: #{tpu_custom_call.1} parent=1 // pred_check_branch
      %14 = sbr.rel (0) target = $region5
    $region4: #{tpu_custom_call.1} parent=1 // pred_region
      %s16 = ssub.s32 256, 256
      %17 = vsyncadd [#allocation3], %s16
      %s18 = sshll.u32 [#allocation2], 4
      %s19 = int_to_ptr.vmem [resolvable:$true] %s18
      %24 = dma.hbm_to_vmem [thread:$0]  %s0, 256, %s19, [#allocation3], 128, 128, 8
    $region5: #{tpu_custom_call.1} parent=1 // pred_fallthru
      _
    // Predicated region
    $region6: #{tpu_custom_call.1} parent=1 // pred_check
      _
    $region7: #{tpu_custom_call.1} parent=1 // pred_check_branch
      %26 = sbr.rel (0) target = $region9
    $region8: #{tpu_custom_call.1} parent=1 // pred_region
      %s28 = ssub.s32 2048, 2048
      %29 = vsyncadd [#allocation6], %s28
      %s30 = sshll.u32 [#allocation5], 4
      %s31 = int_to_ptr.vmem [resolvable:$true] %s30
      %36 = dma.hbm_to_vmem [thread:$0]  %s1, 2048, %s31, [#allocation6], 64, 64, 4
    $region9: #{tpu_custom_call.1} parent=1 // pred_fallthru
      _
    // Predicated region
    $region10: #{tpu_custom_call.1} parent=1 // pred_check
      _
    $region11: #{tpu_custom_call.1} parent=1 // pred_check_branch
      %38 = sbr.rel (0) target = $region13
    $region12: #{tpu_custom_call.1} parent=1 // pred_region
      _
    $region13: #{tpu_custom_call.1} parent=1 // pred_fallthru
      _
    // Predicated region
    $region14: #{tpu_custom_call.1} parent=1 // pred_check
      _
    $region15: #{tpu_custom_call.1} parent=1 // pred_check_branch
      %40 = sbr.rel (0) target = $region17
    $region16: #{tpu_custom_call.1} parent=1 // pred_region
      %s42 = ssub.s32 1024, 1024
      %43 = vsyncadd [#allocation6], %s42
      %s44 = sshll.u32 [#allocation7], 4
      %s45 = int_to_ptr.vmem [resolvable:$true] %s44
      %50 = dma.hbm_to_vmem [thread:$0]  %s3, 1024, %s45, [#allocation6], 64, 64, 4
    $region17: #{tpu_custom_call.1} parent=1 // pred_fallthru
      _
    // Predicated region
    $region18: #{tpu_custom_call.1} parent=1 // pred_check
      _
    $region19: #{tpu_custom_call.1} parent=1 // pred_check_branch
      %52 = sbr.rel (0) target = $region21
    $region20: #{tpu_custom_call.1} parent=1 // pred_region
      _
    $region21: #{tpu_custom_call.1} parent=1 // pred_fallthru
      _
    // Predicated region
    $region22: #{tpu_custom_call.1} parent=1 // pred_check
      _
    $region23: #{tpu_custom_call.1} parent=1 // pred_check_branch
      %54 = sbr.rel (0) target = $region25
    $region24: #{tpu_custom_call.1} parent=1 // pred_region
      %55 = dma.done [#allocation3], 256
    $region25: #{tpu_custom_call.1} parent=1 // pred_fallthru
      _
    // Predicated region
    $region26: #{tpu_custom_call.1} parent=1 // pred_check
      _
    $region27: #{tpu_custom_call.1} parent=1 // pred_check_branch
      %57 = sbr.rel (0) target = $region29
    $region28: #{tpu_custom_call.1} parent=1 // pred_region
      %58 = dma.done [#allocation6], 2048
    $region29: #{tpu_custom_call.1} parent=1 // pred_fallthru
      _
    // Predicated region
    $region30: #{tpu_custom_call.1} parent=1 // pred_check
      _
    $region31: #{tpu_custom_call.1} parent=1 // pred_check_branch
      %60 = sbr.rel (0) target = $region33
    $region32: #{tpu_custom_call.1} parent=1 // pred_region
      %61 = dma.done [#allocation6], 1024
    $region33: #{tpu_custom_call.1} parent=1 // pred_fallthru
      _
    %v63 = vld [vmem:[#allocation2] sm:$0xff]
    %v64 = vld [vmem:[#allocation2 + $0x8] sm:$0xff]
    %v65 = vld [vmem:[#allocation5] sm:$0xf]
    %v66 = vld [vmem:[#allocation5 + $0x4] sm:$0xf]
    %v67 = vld [vmem:[#allocation5 + $0x8] sm:$0xf]
    %v68 = vld [vmem:[#allocation5 + $0xc] sm:$0xf]
    %v69 = vld [vmem:[#allocation5 + $0x10] sm:$0xf]
    %v70 = vld [vmem:[#allocation5 + $0x14] sm:$0xf]
    %v71 = vld [vmem:[#allocation5 + $0x18] sm:$0xf]
    %v72 = vld [vmem:[#allocation5 + $0x1c] sm:$0xf]
    %v73 = vld [vmem:[#allocation5 + $0x20] sm:$0xf]
    %v74 = vld [vmem:[#allocation5 + $0x24] sm:$0xf]
    %v75 = vld [vmem:[#allocation5 + $0x28] sm:$0xf]
    %v76 = vld [vmem:[#allocation5 + $0x2c] sm:$0xf]
    %v77 = vld [vmem:[#allocation5 + $0x30] sm:$0xf]
    %v78 = vld [vmem:[#allocation5 + $0x34] sm:$0xf]
    %v79 = vld [vmem:[#allocation5 + $0x38] sm:$0xf]
    %v80 = vld [vmem:[#allocation5 + $0x3c] sm:$0xf]
    %v81 = vld [vmem:[#allocation5 + $0x40] sm:$0xf]
    %v82 = vld [vmem:[#allocation5 + $0x44] sm:$0xf]
    %v83 = vld [vmem:[#allocation5 + $0x48] sm:$0xf]
    %v84 = vld [vmem:[#allocation5 + $0x4c] sm:$0xf]
    %v85 = vld [vmem:[#allocation5 + $0x50] sm:$0xf]
    %v86 = vld [vmem:[#allocation5 + $0x54] sm:$0xf]
    %v87 = vld [vmem:[#allocation5 + $0x58] sm:$0xf]
    %v88 = vld [vmem:[#allocation5 + $0x5c] sm:$0xf]
    %v89 = vld [vmem:[#allocation5 + $0x60] sm:$0xf]
    %v90 = vld [vmem:[#allocation5 + $0x64] sm:$0xf]
    %v91 = vld [vmem:[#allocation5 + $0x68] sm:$0xf]
    %v92 = vld [vmem:[#allocation5 + $0x6c] sm:$0xf]
    %v93 = vld [vmem:[#allocation5 + $0x70] sm:$0xf]
    %v94 = vld [vmem:[#allocation5 + $0x74] sm:$0xf]
    %v95 = vld [vmem:[#allocation5 + $0x78] sm:$0xf]
    %v96 = vld [vmem:[#allocation5 + $0x7c] sm:$0xf]
    %v97 = vld [vmem:[%s2] sm:$0x1]
    %v99 = vlaneseq
    %v100 = vshrl.u32 %v99, 7
    %v101 = vsub.s32 0, %v100
    %v102 = vrot.slane %v97, %v101
    %v106 = vunpack.c.l.b16 %v63
    %v107 = vunpack.c.h.b16 %v63
    %v108 = vunpack.c.l.b16 %v64
    %v109 = vunpack.c.h.b16 %v64
    %v110 = vpack.c.b16 %v108, %v106
    %v111 = vpack.c.b16 %v109, %v107
    %v146 = vunpack.c.l.b16 %v65
    %v147 = vunpack.c.l.b16 %v66
    %v148 = vunpack.c.l.b16 %v67
    %v149 = vunpack.c.l.b16 %v68
    %v150 = vunpack.c.l.b16 %v69
    %v151 = vunpack.c.l.b16 %v70
    %v152 = vunpack.c.l.b16 %v71
    %v153 = vunpack.c.l.b16 %v72
    %v154 = vunpack.c.l.b16 %v73
    %v155 = vunpack.c.l.b16 %v74
    %v156 = vunpack.c.l.b16 %v75
    %v157 = vunpack.c.l.b16 %v76
    %v158 = vunpack.c.l.b16 %v77
    %v159 = vunpack.c.l.b16 %v78
    %v160 = vunpack.c.l.b16 %v79
    %v161 = vunpack.c.l.b16 %v80
    %v162 = vunpack.c.l.b16 %v81
    %v163 = vunpack.c.l.b16 %v82
    %v164 = vunpack.c.l.b16 %v83
    %v165 = vunpack.c.l.b16 %v84
    %v166 = vunpack.c.l.b16 %v85
    %v167 = vunpack.c.l.b16 %v86
    %v168 = vunpack.c.l.b16 %v87
    %v169 = vunpack.c.l.b16 %v88
    %v170 = vunpack.c.l.b16 %v89
    %v171 = vunpack.c.l.b16 %v90
    %v172 = vunpack.c.l.b16 %v91
    %v173 = vunpack.c.l.b16 %v92
    %v174 = vunpack.c.l.b16 %v93
    %v175 = vunpack.c.l.b16 %v94
    %v176 = vunpack.c.l.b16 %v95
    %v177 = vunpack.c.l.b16 %v96
    %v178 = vpack.c.b16 %v147, %v146
    %v179 = vpack.c.b16 %v149, %v148
    %v180 = vpack.c.b16 %v151, %v150
    %v181 = vpack.c.b16 %v153, %v152
    %v182 = vpack.c.b16 %v155, %v154
    %v183 = vpack.c.b16 %v157, %v156
    %v184 = vpack.c.b16 %v159, %v158
    %v185 = vpack.c.b16 %v161, %v160
    %v186 = vpack.c.b16 %v163, %v162
    %v187 = vpack.c.b16 %v165, %v164
    %v188 = vpack.c.b16 %v167, %v166
    %v189 = vpack.c.b16 %v169, %v168
    %v190 = vpack.c.b16 %v171, %v170
    %v191 = vpack.c.b16 %v173, %v172
    %v192 = vpack.c.b16 %v175, %v174
    %v193 = vpack.c.b16 %v177, %v176
    %210 = vmatprep.subr.bf16.mxu0 0
    %211 = vmatpush1.bf16.msra.mxu0 %v185
    %212 = vmatprep.subr.bf16.mxu0 0
    %213 = vmatpush1.bf16.msra.mxu0 %v184
    %214 = vmatprep.subr.bf16.mxu0 0
    %215 = vmatpush1.bf16.msra.mxu0 %v183
    %216 = vmatprep.subr.bf16.mxu0 0
    %217 = vmatpush1.bf16.msra.mxu0 %v182
    %218 = vmatprep.subr.bf16.mxu0 0
    %219 = vmatpush1.bf16.msra.mxu0 %v181
    %220 = vmatprep.subr.bf16.mxu0 0
    %221 = vmatpush1.bf16.msra.mxu0 %v180
    %222 = vmatprep.subr.bf16.mxu0 0
    %223 = vmatpush1.bf16.msra.mxu0 %v179
    %224 = vmatprep.subr.bf16.mxu0 0
    %225 = vmatpush1.bf16.msra.mxu0 %v178
    %226 = vmatprep.subr.bf16.mxu0 0
    %227 = vmatpush2.bf16.msra.mxu0 %v193
    %228 = vmatprep.subr.bf16.mxu0 0
    %229 = vmatpush2.bf16.msra.mxu0 %v192
    %230 = vmatprep.subr.bf16.mxu0 0
    %231 = vmatpush2.bf16.msra.mxu0 %v191
    %232 = vmatprep.subr.bf16.mxu0 0
    %233 = vmatpush2.bf16.msra.mxu0 %v190
    %234 = vmatprep.subr.bf16.mxu0 0
    %235 = vmatpush2.bf16.msra.mxu0 %v189
    %236 = vmatprep.subr.bf16.mxu0 0
    %237 = vmatpush2.bf16.msra.mxu0 %v188
    %238 = vmatprep.subr.bf16.mxu0 0
    %239 = vmatpush2.bf16.msra.mxu0 %v187
    %240 = vmatprep.subr.bf16.mxu0 0
    %241 = vmatpush2.bf16.msra.mxu0 %v186
    %242 = vmatprep.mubr.bf16.mxu0 %v111
    %243 = vmatmul.mubr.bf16.gmra.mxu0 %v110
    %v244 = vpop.f32.mrf.mxu0
    %v245 = vadd.f32 %v102, %v244
    %v246 = vpop.f32.mrf.mxu0
    %v247 = vpop.f32.mrf.mxu0
    %v248 = vadd.f32 %v102, %v247
    %v249 = vpop.f32.mrf.mxu0
    %250 = vdwg.mxu0
    %v251 = vmax.f32 %v245, 0.0
    %v252 = vmax.f32 %v248, 0.0
    %v253 = vpack.c.bf16 %v252, %v251
    %v254 = vld [vmem:[#allocation7] sm:$0xf]
    %v255 = vld [vmem:[#allocation7 + $0x4] sm:$0xf]
    %v256 = vld [vmem:[#allocation7 + $0x8] sm:$0xf]
    %v257 = vld [vmem:[#allocation7 + $0xc] sm:$0xf]
    %v258 = vld [vmem:[#allocation7 + $0x10] sm:$0xf]
    %v259 = vld [vmem:[#allocation7 + $0x14] sm:$0xf]
    %v260 = vld [vmem:[#allocation7 + $0x18] sm:$0xf]
    %v261 = vld [vmem:[#allocation7 + $0x1c] sm:$0xf]
    %v262 = vld [vmem:[#allocation7 + $0x20] sm:$0xf]
    %v263 = vld [vmem:[#allocation7 + $0x24] sm:$0xf]
    %v264 = vld [vmem:[#allocation7 + $0x28] sm:$0xf]
    %v265 = vld [vmem:[#allocation7 + $0x2c] sm:$0xf]
    %v266 = vld [vmem:[#allocation7 + $0x30] sm:$0xf]
    %v267 = vld [vmem:[#allocation7 + $0x34] sm:$0xf]
    %v268 = vld [vmem:[#allocation7 + $0x38] sm:$0xf]
    %v269 = vld [vmem:[#allocation7 + $0x3c] sm:$0xf]
    %v270 = vld [vmem:[%s4] sm:$0x1]
    %v272 = vlaneseq
    %v273 = vshrl.u32 %v272, 7
    %v274 = vsub.s32 0, %v273
    %v275 = vrot.slane %v270, %v274
    %v293 = vunpack.c.l.b16 %v254
    %v294 = vunpack.c.l.b16 %v255
    %v295 = vunpack.c.l.b16 %v256
    %v296 = vunpack.c.l.b16 %v257
    %v297 = vunpack.c.l.b16 %v258
    %v298 = vunpack.c.l.b16 %v259
    %v299 = vunpack.c.l.b16 %v260
    %v300 = vunpack.c.l.b16 %v261
    %v301 = vunpack.c.l.b16 %v262
    %v302 = vunpack.c.l.b16 %v263
    %v303 = vunpack.c.l.b16 %v264
    %v304 = vunpack.c.l.b16 %v265
    %v305 = vunpack.c.l.b16 %v266
    %v306 = vunpack.c.l.b16 %v267
    %v307 = vunpack.c.l.b16 %v268
    %v308 = vunpack.c.l.b16 %v269
    %v309 = vpack.c.b16 %v294, %v293
    %v310 = vpack.c.b16 %v296, %v295
    %v311 = vpack.c.b16 %v298, %v297
    %v312 = vpack.c.b16 %v300, %v299
    %v313 = vpack.c.b16 %v302, %v301
    %v314 = vpack.c.b16 %v304, %v303
    %v315 = vpack.c.b16 %v306, %v305
    %v316 = vpack.c.b16 %v308, %v307
    %325 = vmatprep.subr.bf16.mxu0 0
    %326 = vmatpush1.bf16.msra.mxu0 %v316
    %327 = vmatprep.subr.bf16.mxu0 0
    %328 = vmatpush1.bf16.msra.mxu0 %v315
    %329 = vmatprep.subr.bf16.mxu0 0
    %330 = vmatpush1.bf16.msra.mxu0 %v314
    %331 = vmatprep.subr.bf16.mxu0 0
    %332 = vmatpush1.bf16.msra.mxu0 %v313
    %333 = vmatprep.subr.bf16.mxu0 0
    %334 = vmatpush1.bf16.msra.mxu0 %v312
    %335 = vmatprep.subr.bf16.mxu0 0
    %336 = vmatpush1.bf16.msra.mxu0 %v311
    %337 = vmatprep.subr.bf16.mxu0 0
    %338 = vmatpush1.bf16.msra.mxu0 %v310
    %339 = vmatprep.subr.bf16.mxu0 0
    %340 = vmatpush1.bf16.msra.mxu0 %v309
    %341 = vmatprep.subr.bf16.mxu0 0
    %342 = vmatpush2.bf16.msra.mxu0 0
    %343 = vmatprep.subr.bf16.mxu0 0
    %344 = vmatpush2.bf16.msra.mxu0 0
    %345 = vmatprep.subr.bf16.mxu0 0
    %346 = vmatpush2.bf16.msra.mxu0 0
    %347 = vmatprep.subr.bf16.mxu0 0
    %348 = vmatpush2.bf16.msra.mxu0 0
    %349 = vmatprep.subr.bf16.mxu0 0
    %350 = vmatpush2.bf16.msra.mxu0 0
    %351 = vmatprep.subr.bf16.mxu0 0
    %352 = vmatpush2.bf16.msra.mxu0 0
    %353 = vmatprep.subr.bf16.mxu0 0
    %354 = vmatpush2.bf16.msra.mxu0 0
    %355 = vmatprep.subr.bf16.mxu0 0
    %356 = vmatpush2.bf16.msra.mxu0 0
    %357 = vmatprep.mubr.bf16.mxu0 0
    %358 = vmatmul.mubr.bf16.gmra.mxu0 %v253
    %v359 = vpop.f32.mrf.mxu0
    %v360 = vadd.f32 %v275, %v359
    %v361 = vpop.f32.mrf.mxu0
    %v362 = vpop.f32.mrf.mxu0
    %v363 = vadd.f32 %v275, %v362
    %v364 = vpop.f32.mrf.mxu0
    %365 = vdwg.mxu0
    %366 = vst [vmem:[#allocation8] sm:$0xff] %v360
    %367 = vst [vmem:[#allocation8 + $0x8] sm:$0xff] %v363
    // Predicated region
    $region34: #{tpu_custom_call.1} parent=1 // pred_check
      _
    $region35: #{tpu_custom_call.1} parent=1 // pred_check_branch
      %369 = sbr.rel (0) target = $region37
    $region36: #{tpu_custom_call.1} parent=1 // pred_region
      %s371 = ssub.s32 256, 256
      %372 = vsyncadd [#allocation4], %s371
      %s373 = sshll.u32 [#allocation8], 4
      %s374 = int_to_ptr.vmem [resolvable:$true] %s373
      %379 = dma.vmem_to_hbm [thread:$0]  %s374, 256, %s5, [#allocation4], 128, 128, 8
    $region37: #{tpu_custom_call.1} parent=1 // pred_fallthru
      _
    // Predicated region
    $region38: #{tpu_custom_call.1} parent=1 // pred_check
      _
    $region39: #{tpu_custom_call.1} parent=1 // pred_check_branch
      %381 = sbr.rel (0) target = $region41
    $region40: #{tpu_custom_call.1} parent=1 // pred_region
      %382 = dma.done [#allocation4], 256
    $region41: #{tpu_custom_call.1} parent=1 // pred_fallthru
      _
    %383 = vsyncpa [#allocation3], 1
    %384 = vsyncpa [#allocation6], 1
    %385 = vsyncpa [#allocation4], 1

// kernel: tpu_custom_call.1
$region0: #{tpu_custom_call.1}
  #allocation0 [shape = 'u32[]', space=smem, size = 0x4, offset = 0x4, fixed_abs, tag = 'smem constant byte address 0x4 - core index']
  #allocation1 [shape = 'u32[144,128]{1,0:T(1,128)}', space=vmem, size = 0x12000, scoped, tag = 'internal scratch']
  %s0 = inlined_call_operand.hbm [shape: bf16[16,256], index: 0, kind: input, shape index: {}]
  %s1 = inlined_call_operand.hbm [shape: bf16[256,128], index: 1, kind: input, shape index: {}]
  %s2 = inlined_call_operand.vmem [shape: f32[1,128], index: 2, kind: input, shape index: {}]
  %s3 = inlined_call_operand.hbm [shape: bf16[128,128], index: 3, kind: input, shape index: {}]
  %s4 = inlined_call_operand.vmem [shape: f32[1,128], index: 4, kind: input, shape index: {}]
  %s5 = inlined_call_operand.hbm [shape: f32[16,128], index: 5, kind: output, shape index: {}]
  %s6 = sld [smem:[#allocation0]]
  $region42: #{tpu_custom_call.1} parent=0
    _
  %s8 = ssub.s32 1, %s6
  %s9 = scalar_select 0, %s8, %s6
  $region1: #{tpu_custom_call.1} parent=0
    #allocation2 [shape = 'u8[8192]{0}', space=vmem, size = 0x2000, scoped, tag = 'input window, operand 0, single buffered']
    #allocation3 [shape = 's32[1]{0}', space=sflag, size = 0x4, scoped, tag = 'scoped memory for tpu_custom_call.1']
    #allocation4 [shape = 's32[1]{0}', space=sflag, size = 0x4, scoped, tag = 'scoped memory for tpu_custom_call.1']
    #allocation5 [shape = 'u8[65536]{0}', space=vmem, size = 0x10000, scoped, tag = 'input window, operand 1, single buffered']
    #allocation6 [shape = 's32[1]{0}', space=sflag, size = 0x4, scoped, tag = 'scoped memory for tpu_custom_call.1']
    #allocation7 [shape = 'u8[32768]{0}', space=vmem, size = 0x8000, scoped, tag = 'input window, operand 3, single buffered']
    #allocation8 [shape = 'u8[8192]{0}', space=vmem, size = 0x2000, scoped, tag = 'output window, operand 0, single buffered']
    %10 = vsyncpa [#allocation3], 0
    %11 = vsyncpa [#allocation6], 0
    %12 = vsyncpa [#allocation4], 0
    // Predicated region
    $region2: #{tpu_custom_call.1} parent=1 // pred_check
      _
    $region3: #{tpu_custom_call.1} parent=1 // pred_check_branch
      %14 = sbr.rel (0) target = $region5
    $region4: #{tpu_custom_call.1} parent=1 // pred_region
      %s16 = ssub.s32 256, 256
      %17 = vsyncadd [#allocation3], %s16
      %s18 = sshll.u32 [#allocation2], 4
      %s19 = int_to_ptr.vmem [resolvable:$true] %s18
      %24 = dma.hbm_to_vmem [thread:$0]  %s0, 256, %s19, [#allocation3], 128, 128, 8
    $region5: #{tpu_custom_call.1} parent=1 // pred_fallthru
      _
    // Predicated region
    $region6: #{tpu_custom_call.1} parent=1 // pred_check
      _
    $region7: #{tpu_custom_call.1} parent=1 // pred_check_branch
      %26 = sbr.rel (0) target = $region9
    $region8: #{tpu_custom_call.1} parent=1 // pred_region
      %s28 = ssub.s32 2048, 2048
      %29 = vsyncadd [#allocation6], %s28
      %s30 = sshll.u32 [#allocation5], 4
      %s31 = int_to_ptr.vmem [resolvable:$true] %s30
      %36 = dma.hbm_to_vmem [thread:$0]  %s1, 2048, %s31, [#allocation6], 64, 64, 4
    $region9: #{tpu_custom_call.1} parent=1 // pred_fallthru
      _
    // Predicated region
    $region10: #{tpu_custom_call.1} parent=1 // pred_check
      _
    $region11: #{tpu_custom_call.1} parent=1 // pred_check_branch
      %38 = sbr.rel (0) target = $region13
    $region12: #{tpu_custom_call.1} parent=1 // pred_region
      _
    $region13: #{tpu_custom_call.1} parent=1 // pred_fallthru
      _
    // Predicated region
    $region14: #{tpu_custom_call.1} parent=1 // pred_check
      _
    $region15: #{tpu_custom_call.1} parent=1 // pred_check_branch
      %40 = sbr.rel (0) target = $region17
    $region16: #{tpu_custom_call.1} parent=1 // pred_region
      %s42 = ssub.s32 1024, 1024
      %43 = vsyncadd [#allocation6], %s42
      %s44 = sshll.u32 [#allocation7], 4
      %s45 = int_to_ptr.vmem [resolvable:$true] %s44
      %50 = dma.hbm_to_vmem [thread:$0]  %s3, 1024, %s45, [#allocation6], 64, 64, 4
    $region17: #{tpu_custom_call.1} parent=1 // pred_fallthru
      _
    // Predicated region
    $region18: #{tpu_custom_call.1} parent=1 // pred_check
      _
    $region19: #{tpu_custom_call.1} parent=1 // pred_check_branch
      %52 = sbr.rel (0) target = $region21
    $region20: #{tpu_custom_call.1} parent=1 // pred_region
      _
    $region21: #{tpu_custom_call.1} parent=1 // pred_fallthru
      _
    // Predicated region
    $region22: #{tpu_custom_call.1} parent=1 // pred_check
      _
    $region23: #{tpu_custom_call.1} parent=1 // pred_check_branch
      %54 = sbr.rel (0) target = $region25
    $region24: #{tpu_custom_call.1} parent=1 // pred_region
      %55 = dma.done [#allocation3], 256
    $region25: #{tpu_custom_call.1} parent=1 // pred_fallthru
      _
    // Predicated region
    $region26: #{tpu_custom_call.1} parent=1 // pred_check
      _
    $region27: #{tpu_custom_call.1} parent=1 // pred_check_branch
      %57 = sbr.rel (0) target = $region29
    $region28: #{tpu_custom_call.1} parent=1 // pred_region
      %58 = dma.done [#allocation6], 2048
    $region29: #{tpu_custom_call.1} parent=1 // pred_fallthru
      _
    // Predicated region
    $region30: #{tpu_custom_call.1} parent=1 // pred_check
      _
    $region31: #{tpu_custom_call.1} parent=1 // pred_check_branch
      %60 = sbr.rel (0) target = $region33
    $region32: #{tpu_custom_call.1} parent=1 // pred_region
      %61 = dma.done [#allocation6], 1024
    $region33: #{tpu_custom_call.1} parent=1 // pred_fallthru
      _
    %v63 = vld [vmem:[#allocation2] sm:$0xff]
    %v64 = vld [vmem:[#allocation2 + $0x8] sm:$0xff]
    %v65 = vld [vmem:[#allocation5] sm:$0xf]
    %v66 = vld [vmem:[#allocation5 + $0x4] sm:$0xf]
    %v67 = vld [vmem:[#allocation5 + $0x8] sm:$0xf]
    %v68 = vld [vmem:[#allocation5 + $0xc] sm:$0xf]
    %v69 = vld [vmem:[#allocation5 + $0x10] sm:$0xf]
    %v70 = vld [vmem:[#allocation5 + $0x14] sm:$0xf]
    %v71 = vld [vmem:[#allocation5 + $0x18] sm:$0xf]
    %v72 = vld [vmem:[#allocation5 + $0x1c] sm:$0xf]
    %v73 = vld [vmem:[#allocation5 + $0x20] sm:$0xf]
    %v74 = vld [vmem:[#allocation5 + $0x24] sm:$0xf]
    %v75 = vld [vmem:[#allocation5 + $0x28] sm:$0xf]
    %v76 = vld [vmem:[#allocation5 + $0x2c] sm:$0xf]
    %v77 = vld [vmem:[#allocation5 + $0x30] sm:$0xf]
    %v78 = vld [vmem:[#allocation5 + $0x34] sm:$0xf]
    %v79 = vld [vmem:[#allocation5 + $0x38] sm:$0xf]
    %v80 = vld [vmem:[#allocation5 + $0x3c] sm:$0xf]
    %v81 = vld [vmem:[#allocation5 + $0x40] sm:$0xf]
    %v82 = vld [vmem:[#allocation5 + $0x44] sm:$0xf]
    %v83 = vld [vmem:[#allocation5 + $0x48] sm:$0xf]
    %v84 = vld [vmem:[#allocation5 + $0x4c] sm:$0xf]
    %v85 = vld [vmem:[#allocation5 + $0x50] sm:$0xf]
    %v86 = vld [vmem:[#allocation5 + $0x54] sm:$0xf]
    %v87 = vld [vmem:[#allocation5 + $0x58] sm:$0xf]
    %v88 = vld [vmem:[#allocation5 + $0x5c] sm:$0xf]
    %v89 = vld [vmem:[#allocation5 + $0x60] sm:$0xf]
    %v90 = vld [vmem:[#allocation5 + $0x64] sm:$0xf]
    %v91 = vld [vmem:[#allocation5 + $0x68] sm:$0xf]
    %v92 = vld [vmem:[#allocation5 + $0x6c] sm:$0xf]
    %v93 = vld [vmem:[#allocation5 + $0x70] sm:$0xf]
    %v94 = vld [vmem:[#allocation5 + $0x74] sm:$0xf]
    %v95 = vld [vmem:[#allocation5 + $0x78] sm:$0xf]
    %v96 = vld [vmem:[#allocation5 + $0x7c] sm:$0xf]
    %v97 = vld [vmem:[%s2] sm:$0x1]
    %v99 = vlaneseq
    %v100 = vshrl.u32 %v99, 7
    %v101 = vsub.s32 0, %v100
    %v102 = vrot.slane %v97, %v101
    %v106 = vunpack.c.l.b16 %v63
    %v107 = vunpack.c.h.b16 %v63
    %v108 = vunpack.c.l.b16 %v64
    %v109 = vunpack.c.h.b16 %v64
    %v110 = vpack.c.b16 %v108, %v106
    %v111 = vpack.c.b16 %v109, %v107
    %v146 = vunpack.c.l.b16 %v65
    %v147 = vunpack.c.l.b16 %v66
    %v148 = vunpack.c.l.b16 %v67
    %v149 = vunpack.c.l.b16 %v68
    %v150 = vunpack.c.l.b16 %v69
    %v151 = vunpack.c.l.b16 %v70
    %v152 = vunpack.c.l.b16 %v71
    %v153 = vunpack.c.l.b16 %v72
    %v154 = vunpack.c.l.b16 %v73
    %v155 = vunpack.c.l.b16 %v74
    %v156 = vunpack.c.l.b16 %v75
    %v157 = vunpack.c.l.b16 %v76
    %v158 = vunpack.c.l.b16 %v77
    %v159 = vunpack.c.l.b16 %v78
    %v160 = vunpack.c.l.b16 %v79
    %v161 = vunpack.c.l.b16 %v80
    %v162 = vunpack.c.l.b16 %v81
    %v163 = vunpack.c.l.b16 %v82
    %v164 = vunpack.c.l.b16 %v83
    %v165 = vunpack.c.l.b16 %v84
    %v166 = vunpack.c.l.b16 %v85
    %v167 = vunpack.c.l.b16 %v86
    %v168 = vunpack.c.l.b16 %v87
    %v169 = vunpack.c.l.b16 %v88
    %v170 = vunpack.c.l.b16 %v89
    %v171 = vunpack.c.l.b16 %v90
    %v172 = vunpack.c.l.b16 %v91
    %v173 = vunpack.c.l.b16 %v92
    %v174 = vunpack.c.l.b16 %v93
    %v175 = vunpack.c.l.b16 %v94
    %v176 = vunpack.c.l.b16 %v95
    %v177 = vunpack.c.l.b16 %v96
    %v178 = vpack.c.b16 %v147, %v146
    %v179 = vpack.c.b16 %v149, %v148
    %v180 = vpack.c.b16 %v151, %v150
    %v181 = vpack.c.b16 %v153, %v152
    %v182 = vpack.c.b16 %v155, %v154
    %v183 = vpack.c.b16 %v157, %v156
    %v184 = vpack.c.b16 %v159, %v158
    %v185 = vpack.c.b16 %v161, %v160
    %v186 = vpack.c.b16 %v163, %v162
    %v187 = vpack.c.b16 %v165, %v164
    %v188 = vpack.c.b16 %v167, %v166
    %v189 = vpack.c.b16 %v169, %v168
    %v190 = vpack.c.b16 %v171, %v170
    %v191 = vpack.c.b16 %v173, %v172
    %v192 = vpack.c.b16 %v175, %v174
    %v193 = vpack.c.b16 %v177, %v176
    %210 = vmatprep.subr.bf16.mxu0 0
    %211 = vmatpush1.bf16.msra.mxu0 %v185
    %212 = vmatprep.subr.bf16.mxu0 0
    %213 = vmatpush1.bf16.msra.mxu0 %v184
    %214 = vmatprep.subr.bf16.mxu0 0
    %215 = vmatpush1.bf16.msra.mxu0 %v183
    %216 = vmatprep.subr.bf16.mxu0 0
    %217 = vmatpush1.bf16.msra.mxu0 %v182
    %218 = vmatprep.subr.bf16.mxu0 0
    %219 = vmatpush1.bf16.msra.mxu0 %v181
    %220 = vmatprep.subr.bf16.mxu0 0
    %221 = vmatpush1.bf16.msra.mxu0 %v180
    %222 = vmatprep.subr.bf16.mxu0 0
    %223 = vmatpush1.bf16.msra.mxu0 %v179
    %224 = vmatprep.subr.bf16.mxu0 0
    %225 = vmatpush1.bf16.msra.mxu0 %v178
    %226 = vmatprep.subr.bf16.mxu0 0
    %227 = vmatpush2.bf16.msra.mxu0 %v193
    %228 = vmatprep.subr.bf16.mxu0 0
    %229 = vmatpush2.bf16.msra.mxu0 %v192
    %230 = vmatprep.subr.bf16.mxu0 0
    %231 = vmatpush2.bf16.msra.mxu0 %v191
    %232 = vmatprep.subr.bf16.mxu0 0
    %233 = vmatpush2.bf16.msra.mxu0 %v190
    %234 = vmatprep.subr.bf16.mxu0 0
    %235 = vmatpush2.bf16.msra.mxu0 %v189
    %236 = vmatprep.subr.bf16.mxu0 0
    %237 = vmatpush2.bf16.msra.mxu0 %v188
    %238 = vmatprep.subr.bf16.mxu0 0
    %239 = vmatpush2.bf16.msra.mxu0 %v187
    %240 = vmatprep.subr.bf16.mxu0 0
    %241 = vmatpush2.bf16.msra.mxu0 %v186
    %242 = vmatprep.mubr.bf16.mxu0 %v111
    %243 = vmatmul.mubr.bf16.gmra.mxu0 %v110
    %v244 = vpop.f32.mrf.mxu0
    %v245 = vadd.f32 %v102, %v244
    %v246 = vpop.f32.mrf.mxu0
    %v247 = vpop.f32.mrf.mxu0
    %v248 = vadd.f32 %v102, %v247
    %v249 = vpop.f32.mrf.mxu0
    %250 = vdwg.mxu0
    %v251 = vmax.f32 %v245, 0.0
    %v252 = vmax.f32 %v248, 0.0
    %v253 = vpack.c.bf16 %v252, %v251
    %v254 = vld [vmem:[#allocation7] sm:$0xf]
    %v255 = vld [vmem:[#allocation7 + $0x4] sm:$0xf]
    %v256 = vld [vmem:[#allocation7 + $0x8] sm:$0xf]
    %v257 = vld [vmem:[#allocation7 + $0xc] sm:$0xf]
    %v258 = vld [vmem:[#allocation7 + $0x10] sm:$0xf]
    %v259 = vld [vmem:[#allocation7 + $0x14] sm:$0xf]
    %v260 = vld [vmem:[#allocation7 + $0x18] sm:$0xf]
    %v261 = vld [vmem:[#allocation7 + $0x1c] sm:$0xf]
    %v262 = vld [vmem:[#allocation7 + $0x20] sm:$0xf]
    %v263 = vld [vmem:[#allocation7 + $0x24] sm:$0xf]
    %v264 = vld [vmem:[#allocation7 + $0x28] sm:$0xf]
    %v265 = vld [vmem:[#allocation7 + $0x2c] sm:$0xf]
    %v266 = vld [vmem:[#allocation7 + $0x30] sm:$0xf]
    %v267 = vld [vmem:[#allocation7 + $0x34] sm:$0xf]
    %v268 = vld [vmem:[#allocation7 + $0x38] sm:$0xf]
    %v269 = vld [vmem:[#allocation7 + $0x3c] sm:$0xf]
    %v270 = vld [vmem:[%s4] sm:$0x1]
    %v272 = vlaneseq
    %v273 = vshrl.u32 %v272, 7
    %v274 = vsub.s32 0, %v273
    %v275 = vrot.slane %v270, %v274
    %v293 = vunpack.c.l.b16 %v254
    %v294 = vunpack.c.l.b16 %v255
    %v295 = vunpack.c.l.b16 %v256
    %v296 = vunpack.c.l.b16 %v257
    %v297 = vunpack.c.l.b16 %v258
    %v298 = vunpack.c.l.b16 %v259
    %v299 = vunpack.c.l.b16 %v260
    %v300 = vunpack.c.l.b16 %v261
    %v301 = vunpack.c.l.b16 %v262
    %v302 = vunpack.c.l.b16 %v263
    %v303 = vunpack.c.l.b16 %v264
    %v304 = vunpack.c.l.b16 %v265
    %v305 = vunpack.c.l.b16 %v266
    %v306 = vunpack.c.l.b16 %v267
    %v307 = vunpack.c.l.b16 %v268
    %v308 = vunpack.c.l.b16 %v269
    %v309 = vpack.c.b16 %v294, %v293
    %v310 = vpack.c.b16 %v296, %v295
    %v311 = vpack.c.b16 %v298, %v297
    %v312 = vpack.c.b16 %v300, %v299
    %v313 = vpack.c.b16 %v302, %v301
    %v314 = vpack.c.b16 %v304, %v303
    %v315 = vpack.c.b16 %v306, %v305
    %v316 = vpack.c.b16 %v308, %v307
    %325 = vmatprep.subr.bf16.mxu0 0
    %326 = vmatpush1.bf16.msra.mxu0 %v316
    %327 = vmatprep.subr.bf16.mxu0 0
    %328 = vmatpush1.bf16.msra.mxu0 %v315
    %329 = vmatprep.subr.bf16.mxu0 0
    %330 = vmatpush1.bf16.msra.mxu0 %v314
    %331 = vmatprep.subr.bf16.mxu0 0
    %332 = vmatpush1.bf16.msra.mxu0 %v313
    %333 = vmatprep.subr.bf16.mxu0 0
    %334 = vmatpush1.bf16.msra.mxu0 %v312
    %335 = vmatprep.subr.bf16.mxu0 0
    %336 = vmatpush1.bf16.msra.mxu0 %v311
    %337 = vmatprep.subr.bf16.mxu0 0
    %338 = vmatpush1.bf16.msra.mxu0 %v310
    %339 = vmatprep.subr.bf16.mxu0 0
    %340 = vmatpush1.bf16.msra.mxu0 %v309
    %341 = vmatprep.subr.bf16.mxu0 0
    %342 = vmatpush2.bf16.msra.mxu0 0
    %343 = vmatprep.subr.bf16.mxu0 0
    %344 = vmatpush2.bf16.msra.mxu0 0
    %345 = vmatprep.subr.bf16.mxu0 0
    %346 = vmatpush2.bf16.msra.mxu0 0
    %347 = vmatprep.subr.bf16.mxu0 0
    %348 = vmatpush2.bf16.msra.mxu0 0
    %349 = vmatprep.subr.bf16.mxu0 0
    %350 = vmatpush2.bf16.msra.mxu0 0
    %351 = vmatprep.subr.bf16.mxu0 0
    %352 = vmatpush2.bf16.msra.mxu0 0
    %353 = vmatprep.subr.bf16.mxu0 0
    %354 = vmatpush2.bf16.msra.mxu0 0
    %355 = vmatprep.subr.bf16.mxu0 0
    %356 = vmatpush2.bf16.msra.mxu0 0
    %357 = vmatprep.mubr.bf16.mxu0 0
    %358 = vmatmul.mubr.bf16.gmra.mxu0 %v253
    %v359 = vpop.f32.mrf.mxu0
    %v360 = vadd.f32 %v275, %v359
    %v361 = vpop.f32.mrf.mxu0
    %v362 = vpop.f32.mrf.mxu0
    %v363 = vadd.f32 %v275, %v362
    %v364 = vpop.f32.mrf.mxu0
    %365 = vdwg.mxu0
    %366 = vst [vmem:[#allocation8] sm:$0xff] %v360
    %367 = vst [vmem:[#allocation8 + $0x8] sm:$0xff] %v363
    // Predicated region
    $region34: #{tpu_custom_call.1} parent=1 // pred_check
      _
    $region35: #{tpu_custom_call.1} parent=1 // pred_check_branch
      %369 = sbr.rel (0) target = $region37
    $region36: #{tpu_custom_call.1} parent=1 // pred_region
      %s371 = ssub.s32 256, 256
      %372 = vsyncadd [#allocation4], %s371
      %s373 = sshll.u32 [#allocation8], 4
      %s374 = int_to_ptr.vmem [resolvable:$true] %s373
      %379 = dma.vmem_to_hbm [thread:$0]  %s374, 256, %s5, [#allocation4], 128, 128, 8
    $region37: #{tpu_custom_call.1} parent=1 // pred_fallthru
      _
    // Predicated region
    $region38: #{tpu_custom_call.1} parent=1 // pred_check
      _
    $region39: #{tpu_custom_call.1} parent=1 // pred_check_branch
      %381 = sbr.rel (0) target = $region41
    $region40: #{tpu_custom_call.1} parent=1 // pred_region
      %382 = dma.done [#allocation4], 256
    $region41: #{tpu_custom_call.1} parent=1 // pred_fallthru
      _
    %383 = vsyncpa [#allocation3], 1
    %384 = vsyncpa [#allocation6], 1
    %385 = vsyncpa [#allocation4], 1

</llo_original>
